<compile_context>
chip_gen: v5e
topology: v5e:2x2
jax: 0.10.0
libtpu: 0.0.40
codegen_flags: <defaults>
</compile_context>

<pallas_src>
import math
import jax
import jax.numpy as jnp
from jax import lax
from jax.experimental import pallas as pl
from jax.experimental.pallas import tpu as pltpu


def _multinet_linear_kernel(x_ref, w_ref, b_ref, o_ref):
    # x_ref: (G, B, K)  w_ref: (G, F, K)  b_ref: (G, 1, F)  o_ref: (G, B, F)
    prod = lax.dot_general(
        x_ref[...], w_ref[...],
        dimension_numbers=(((2,), (2,)), ((0,), (0,))),   # contract K, batch G
        preferred_element_type=jnp.float32,
    )                                                     # (G, B, F) in f32
    out = prod + b_ref[...].astype(jnp.float32)           # (G,1,F) broadcasts
    o_ref[...] = out.astype(o_ref.dtype)


def _choose_group_size(N, B, K, F, itemsize, vmem_budget_bytes=16 * 1024 * 1024):
    """Largest divisor G of N such that the double-buffered blocks fit the
    (conservative, all-generations-safe) VMEM budget, preferring >= 2 grid
    steps so a megacore/2-TC chip can shard the 'parallel' axis."""
    per_net_bytes = itemsize * (B * K + F * K + F) + 4 * (B * F)  # f32 out acc
    g_max = max(1, vmem_budget_bytes // (2 * per_net_bytes))      # 2x: dbl-buf
    if N >= 2:
        g_max = min(g_max, max(1, N // 2))                        # >=2 steps
    g = 1
    for d in range(1, N + 1):
        if N % d == 0 and d <= g_max:
            g = d
    return g


def multi_network_linear(x, weight, bias):
    """x: (N, B, K), weight: (N, F, K), bias: (N, F) -> (N, B, F)."""
    N, B, K = x.shape
    _, F, _ = weight.shape
    bias3 = bias.reshape(N, 1, F)          # keep block last-two dims == array dims

    G = _choose_group_size(N, B, K, F, jnp.dtype(x.dtype).itemsize)
    num_steps = N // G

    grid_spec = pltpu.PrefetchScalarGridSpec(
        num_scalar_prefetch=0,
        grid=(num_steps,),
        in_specs=[
            pl.BlockSpec((G, B, K), lambda n: (n, 0, 0)),
            pl.BlockSpec((G, F, K), lambda n: (n, 0, 0)),
            pl.BlockSpec((G, 1, F), lambda n: (n, 0, 0)),
        ],
        out_specs=pl.BlockSpec((G, B, F), lambda n: (n, 0, 0)),
    )

    itemsize = jnp.dtype(x.dtype).itemsize
    cost = pl.CostEstimate(
        flops=2 * N * B * K * F,
        transcendentals=0,
        bytes_accessed=itemsize * (N * B * K + N * F * K + N * F + N * B * F),
    )

    return pl.pallas_call(
        _multinet_linear_kernel,
        out_shape=jax.ShapeDtypeStruct((N, B, F), x.dtype),
        grid_spec=grid_spec,
        compiler_params=pltpu.CompilerParams(
            dimension_semantics=("parallel",),
        ),
        cost_estimate=cost,
    )(x, weight, bias3)


def init_params(key, num_networks, in_features, out_features):
    """Deterministic init matching MultiNetworkLinear.reset_parameters
    (kaiming_uniform_ with a=sqrt(5), nonlinearity='leaky_relu',
     bias 'standard' uniform(-1/sqrt(fan_in), 1/sqrt(fan_in)))."""
    kw, kb = jax.random.split(key)
    fan_in = in_features                       # last dim of weight tensor
    gain = math.sqrt(2.0 / (1 + (math.sqrt(5)) ** 2))
    std = gain / math.sqrt(fan_in)
    w_bound = math.sqrt(3.0) * std
    weight = jax.random.uniform(
        kw, (num_networks, out_features, in_features),
        minval=-w_bound, maxval=w_bound, dtype=jnp.float32)
    b_bound = 1.0 / math.sqrt(fan_in)
    bias = jax.random.uniform(
        kb, (num_networks, out_features),
        minval=-b_bound, maxval=b_bound, dtype=jnp.float32)
    return weight, bias


if __name__ == "__main__":
    num_networks, batch, in_features, out_features = 8, 8, 32, 32

    key = jax.random.PRNGKey(0)
    k_x, k_p = jax.random.split(key)
    x = jax.random.normal(k_x, (num_networks, batch, in_features), jnp.float32)
    weight, bias = init_params(k_p, num_networks, in_features, out_features)

    out = multi_network_linear(x, weight, bias)
    out = jax.block_until_ready(out)

    # Reference check (plain JAX, mirrors the torch.bmm path)
    ref = jnp.einsum("nbk,nfk->nbf", x, weight) + bias[:, None, :]
    assert out.shape == (num_networks, batch, out_features)
    assert jnp.allclose(out, ref, atol=1e-5, rtol=1e-5)

    print("KERNEL_OK")
</pallas_src>

<mosaic_0001>
module attributes {stable_mosaic.version = 11 : i64} {
  func.func @_multinet_linear_kernel(%arg0: i32, %arg1: memref<4x8x32xf32, #tpu.memory_space<vmem>>, %arg2: memref<4x32x32xf32, #tpu.memory_space<vmem>>, %arg3: memref<4x1x32xf32, #tpu.memory_space<vmem>>, %arg4: memref<4x8x32xf32, #tpu.memory_space<vmem>>) attributes {dimension_semantics = [#tpu.dimension_semantics<parallel>], iteration_bounds = array<i64: 2>, scalar_prefetch = 0 : i64, scratch_operands = 0 : i64, tpu.core_type = #tpu.core_type<tc>, window_params = [{transform_indices = @transform_0, window_bounds = array<i64: 4, 8, 32>}, {transform_indices = @transform_1, window_bounds = array<i64: 4, 32, 32>}, {transform_indices = @transform_2, window_bounds = array<i64: 4, 1, 32>}, {transform_indices = @transform_3, window_bounds = array<i64: 4, 8, 32>}]} {
    %c0 = arith.constant 0 : index
    %c0_0 = arith.constant 0 : index
    %c0_1 = arith.constant 0 : index
    %0 = vector.load %arg1[%c0, %c0_0, %c0_1] : memref<4x8x32xf32, #tpu.memory_space<vmem>>, vector<4x8x32xf32>
    %c0_2 = arith.constant 0 : index
    %c0_3 = arith.constant 0 : index
    %c0_4 = arith.constant 0 : index
    %1 = vector.load %arg2[%c0_2, %c0_3, %c0_4] : memref<4x32x32xf32, #tpu.memory_space<vmem>>, vector<4x32x32xf32>
    %cst = arith.constant dense<0.000000e+00> : vector<4x8x32xf32>
    %2 = tpu.matmul %0, %1, %cst {dimension_numbers = #tpu.dot_dimension_numbers<[2], [2], [1], [1], [0, 0, 0, 1, 1, 1], [0], [0]>} : vector<4x8x32xf32>, vector<4x32x32xf32>, vector<4x8x32xf32> -> vector<4x8x32xf32>
    %c0_5 = arith.constant 0 : index
    %c0_6 = arith.constant 0 : index
    %c0_7 = arith.constant 0 : index
    %3 = vector.load %arg3[%c0_5, %c0_6, %c0_7] : memref<4x1x32xf32, #tpu.memory_space<vmem>>, vector<4x1x32xf32>
    %4 = vector.broadcast %3 : vector<4x1x32xf32> to vector<4x8x32xf32>
    %5 = arith.addf %2, %4 : vector<4x8x32xf32>
    %c0_8 = arith.constant 0 : index
    %c0_9 = arith.constant 0 : index
    %c0_10 = arith.constant 0 : index
    %6 = vector.load %arg4[%c0_8, %c0_9, %c0_10] : memref<4x8x32xf32, #tpu.memory_space<vmem>>, vector<4x8x32xf32>
    tpu.vector_store %arg4[%c0_8, %c0_9, %c0_10], %5 {strides = array<i32>} : memref<4x8x32xf32, #tpu.memory_space<vmem>>, vector<4x8x32xf32>,
    return
  }
  func.func @transform_0(%arg0: i32) -> (i32, i32, i32) {
    %c0_i32 = arith.constant 0 : i32
    %c0_i32_0 = arith.constant 0 : i32
    %c0_i32_1 = arith.constant 0 : i32
    return %arg0, %c0_i32, %c0_i32_0 : i32, i32, i32
  }
  func.func @transform_1(%arg0: i32) -> (i32, i32, i32) {
    %c0_i32 = arith.constant 0 : i32
    %c0_i32_0 = arith.constant 0 : i32
    %c0_i32_1 = arith.constant 0 : i32
    return %arg0, %c0_i32, %c0_i32_0 : i32, i32, i32
  }
  func.func @transform_2(%arg0: i32) -> (i32, i32, i32) {
    %c0_i32 = arith.constant 0 : i32
    %c0_i32_0 = arith.constant 0 : i32
    %c0_i32_1 = arith.constant 0 : i32
    return %arg0, %c0_i32, %c0_i32_0 : i32, i32, i32
  }
  func.func @transform_3(%arg0: i32) -> (i32, i32, i32) {
    %c0_i32 = arith.constant 0 : i32
    %c0_i32_0 = arith.constant 0 : i32
    %c0_i32_1 = arith.constant 0 : i32
    return %arg0, %c0_i32, %c0_i32_0 : i32, i32, i32
  }
}

</mosaic_0001>

<llo_original>
// kernel: tpu_custom_call.1
$region0: #{tpu_custom_call.1}
  #allocation0 [shape = 'u32[]', space=smem, size = 0x4, offset = 0x4, fixed_abs, tag = 'smem constant byte address 0x4 - core index']
  #allocation1 [shape = 'u32[72,128]{1,0:T(1,128)}', space=vmem, size = 0x9000, scoped, tag = 'internal scratch']
  %s0 = inlined_call_operand.hbm [shape: f32[8,8,32], index: 0, kind: input, shape index: {}]
  %s1 = inlined_call_operand.hbm [shape: f32[8,32,32], index: 1, kind: input, shape index: {}]
  %s2 = inlined_call_operand.hbm [shape: f32[8,1,32], index: 2, kind: input, shape index: {}]
  %s3 = inlined_call_operand.hbm [shape: f32[8,8,32], index: 3, kind: output, shape index: {}]
  %s4 = sld [smem:[#allocation0]]
  $region57: #{tpu_custom_call.1} parent=0
    _
  %s6 = ssub.s32 1, %s4
  %s7 = scalar_select 0, %s6, %s4
  $region1: #{tpu_custom_call.1} parent=0
    #allocation2 [shape = 'u8[32768]{0}', space=vmem, size = 0x8000, scoped, tag = 'input window, operand 0']
    #allocation3 [shape = 's32[2]{0}', space=sflag, size = 0x8, scoped, tag = 'scoped memory for tpu_custom_call.1']
    #allocation4 [shape = 's32[2]{0}', space=sflag, size = 0x8, scoped, tag = 'scoped memory for tpu_custom_call.1']
    #allocation5 [shape = 'u8[131072]{0}', space=vmem, size = 0x20000, scoped, tag = 'input window, operand 1']
    #allocation6 [shape = 's32[2]{0}', space=sflag, size = 0x8, scoped, tag = 'scoped memory for tpu_custom_call.1']
    #allocation7 [shape = 'u8[4096]{0}', space=vmem, size = 0x1000, scoped, tag = 'input window, operand 2']
    #allocation8 [shape = 'u8[32768]{0}', space=vmem, size = 0x8000, scoped, tag = 'output window, operand 0']
    %8 = vsyncpa [#allocation3], 0
    %s9 = scalar_lea.sflag [#allocation3], 1
    %10 = vsyncpa %s9, 0
    %11 = vsyncpa [#allocation6], 0
    %s12 = scalar_lea.sflag [#allocation6], 1
    %13 = vsyncpa %s12, 0
    %14 = vsyncpa [#allocation4], 0
    %s15 = scalar_lea.sflag [#allocation4], 1
    %16 = vsyncpa %s15, 0
    loop: start=0, step=1, limit=4
    $region2: #{tpu_custom_call.1} parent=1 // loop_pre_header
      _
    $region3: #{tpu_custom_call.1} parent=1 // loop_header
      %s18 = sphi 0, %s22
      %p19 = scmp.ge.s32.totalorder %s18, 4
      %s28 = sphi 0, %s30
      %s31 = sphi 0, %s28
      %s32 = sphi 0, %s31
      %s48 = sphi 0, %s32
      %s54 = sphi 0, %s56
      %s57 = sphi 0, %s54
      %s58 = sphi 0, %s57
      %s74 = sphi 0, %s58
      %s80 = sphi 0, %s82
      %s83 = sphi 0, %s80
      %s84 = sphi 0, %s83
      %s100 = sphi 0, %s84
      %s106 = sphi 0, %s108
      %s109 = sphi 0, %s106
      %s110 = sphi 0, %s109
      %s126 = sphi 0, %s110
    $region4: #{tpu_custom_call.1} parent=1 // loop_header_branch
      %21 = sbr.rel (%p19) target = $region8
    $region5: #{tpu_custom_call.1} parent=1 // loop_body
      %s23 = ssub.s32 %s18, 1
      %s24 = ssub.s32 %s18, 2
      %s25 = sadd.s32 %s18, 1
      %s26 = ssub.s32 %s18, %s25
      %p27 = scmp.eq.s32.totalorder %s26, 0
      %s29 = sadd.s32 %s28, 1
      %s30 = scalar_select %p27, %s28, %s29
      %p33 = pneg %p27
      %p34 = scmp.eq.s32.totalorder %s18, 1
      %p35 = por %p33, %p34
      %p36 = scmp.ne.s32.totalorder %s28, %s31
      %p37 = scmp.eq.s32.totalorder %s18, 0
      %p38 = por %p36, %p37
      %p39 = scmp.ne.s32.totalorder %s28, %s31
      %p40 = scmp.eq.s32.totalorder %s23, 1
      %p41 = por %p39, %p40
      %p42 = scmp.ne.s32.totalorder %s31, %s32
      %p43 = scmp.eq.s32.totalorder %s23, 0
      %p44 = por %p42, %p43
      %p45 = scmp.ne.s32.totalorder %s31, %s32
      %p46 = scmp.eq.s32.totalorder %s24, 1
      %p47 = por %p45, %p46
      %p49 = scmp.ne.s32.totalorder %s32, %s48
      %p50 = scmp.eq.s32.totalorder %s24, 0
      %p51 = por %p49, %p50
      %s52 = ssub.s32 %s18, %s25
      %p53 = scmp.eq.s32.totalorder %s52, 0
      %s55 = sadd.s32 %s54, 1
      %s56 = scalar_select %p53, %s54, %s55
      %p59 = pneg %p53
      %p60 = scmp.eq.s32.totalorder %s18, 1
      %p61 = por %p59, %p60
      %p62 = scmp.ne.s32.totalorder %s54, %s57
      %p63 = scmp.eq.s32.totalorder %s18, 0
      %p64 = por %p62, %p63
      %p65 = scmp.ne.s32.totalorder %s54, %s57
      %p66 = scmp.eq.s32.totalorder %s23, 1
      %p67 = por %p65, %p66
      %p68 = scmp.ne.s32.totalorder %s57, %s58
      %p69 = scmp.eq.s32.totalorder %s23, 0
      %p70 = por %p68, %p69
      %p71 = scmp.ne.s32.totalorder %s57, %s58
      %p72 = scmp.eq.s32.totalorder %s24, 1
      %p73 = por %p71, %p72
      %p75 = scmp.ne.s32.totalorder %s58, %s74
      %p76 = scmp.eq.s32.totalorder %s24, 0
      %p77 = por %p75, %p76
      %s78 = ssub.s32 %s18, %s25
      %p79 = scmp.eq.s32.totalorder %s78, 0
      %s81 = sadd.s32 %s80, 1
      %s82 = scalar_select %p79, %s80, %s81
      %p85 = pneg %p79
      %p86 = scmp.eq.s32.totalorder %s18, 1
      %p87 = por %p85, %p86
      %p88 = scmp.ne.s32.totalorder %s80, %s83
      %p89 = scmp.eq.s32.totalorder %s18, 0
      %p90 = por %p88, %p89
      %p91 = scmp.ne.s32.totalorder %s80, %s83
      %p92 = scmp.eq.s32.totalorder %s23, 1
      %p93 = por %p91, %p92
      %p94 = scmp.ne.s32.totalorder %s83, %s84
      %p95 = scmp.eq.s32.totalorder %s23, 0
      %p96 = por %p94, %p95
      %p97 = scmp.ne.s32.totalorder %s83, %s84
      %p98 = scmp.eq.s32.totalorder %s24, 1
      %p99 = por %p97, %p98
      %p101 = scmp.ne.s32.totalorder %s84, %s100
      %p102 = scmp.eq.s32.totalorder %s24, 0
      %p103 = por %p101, %p102
      %s104 = ssub.s32 %s18, %s25
      %p105 = scmp.eq.s32.totalorder %s104, 0
      %s107 = sadd.s32 %s106, 1
      %s108 = scalar_select %p105, %s106, %s107
      %p111 = pneg %p105
      %p112 = scmp.eq.s32.totalorder %s18, 1
      %p113 = por %p111, %p112
      %p114 = scmp.ne.s32.totalorder %s106, %s109
      %p115 = scmp.eq.s32.totalorder %s18, 0
      %p116 = por %p114, %p115
      %p117 = scmp.ne.s32.totalorder %s106, %s109
      %p118 = scmp.eq.s32.totalorder %s23, 1
      %p119 = por %p117, %p118
      %p120 = scmp.ne.s32.totalorder %s109, %s110
      %p121 = scmp.eq.s32.totalorder %s23, 0
      %p122 = por %p120, %p121
      %p123 = scmp.ne.s32.totalorder %s109, %s110
      %p124 = scmp.eq.s32.totalorder %s24, 1
      %p125 = por %p123, %p124
      %p127 = scmp.ne.s32.totalorder %s110, %s126
      %p128 = scmp.eq.s32.totalorder %s24, 0
      %p129 = por %p127, %p128
      %p130 = scmp.le.s32.totalorder 1, %s18
      %p131 = scmp.lt.s32.totalorder %s18, 3
      %p132 = pnand %p130, %p131
      %p133 = pneg %p132
      // Predicated region
      $region9: #{tpu_custom_call.1} parent=5 // pred_check
        _
      $region10: #{tpu_custom_call.1} parent=5 // pred_check_branch
        %135 = sbr.rel (%p132) target = $region12
      $region11: #{tpu_custom_call.1} parent=5 // pred_region
        %s136 = ssub.s32 %s18, 1
      $region12: #{tpu_custom_call.1} parent=5 // pred_fallthru
        _
      %p137 = scmp.lt.s32.totalorder %s18, 2
      // Predicated region
      $region13: #{tpu_custom_call.1} parent=5 // pred_check
        %p138 = pneg %p137
      $region14: #{tpu_custom_call.1} parent=5 // pred_check_branch
        %140 = sbr.rel (%p138) target = $region16
      $region15: #{tpu_custom_call.1} parent=5 // pred_region
        // Predicated region
        $region17: #{tpu_custom_call.1} parent=15 // pred_check
          %p141 = pneg %p38
        $region18: #{tpu_custom_call.1} parent=15 // pred_check_branch
          %143 = sbr.rel (%p141) target = $region20
        $region19: #{tpu_custom_call.1} parent=15 // pred_region
          %s144 = sand.u32 %s28, 1
          %s145 = scalar_lea.sflag [#allocation3], %s144
          %s146 = sand.u32 %s28, 1
          %s147 = smul.addr %s146, 32
          %s148 = scalar_lea.vmem [#allocation2], %s147
          %s149 = smul.u32 4, %s18
          %151 = vsyncadd %s145, 0
          %s152 = smul.addr %s149, 8
          %s153 = scalar_lea.hbm %s0, %s152
          %s154 = sshll.u32 %s153, 4
          %s155 = int_to_ptr.hbm [resolvable:$true] %s154
          %s156 = sshll.u32 %s148, 4
          %s157 = int_to_ptr.vmem [resolvable:$true] %s156
          %162 = dma.hbm_to_vmem [thread:$0]  %s155, 512, %s157, %s145, 128, 128, 8
        $region20: #{tpu_custom_call.1} parent=15 // pred_fallthru
          _
        // Predicated region
        $region21: #{tpu_custom_call.1} parent=15 // pred_check
          %p163 = pneg %p64
        $region22: #{tpu_custom_call.1} parent=15 // pred_check_branch
          %165 = sbr.rel (%p163) target = $region24
        $region23: #{tpu_custom_call.1} parent=15 // pred_region
          %s166 = sand.u32 %s18, 1
          %s167 = scalar_lea.sflag [#allocation6], %s166
          %s168 = sand.u32 %s54, 1
          %s169 = smul.addr %s168, 128
          %s170 = scalar_lea.vmem [#allocation5], %s169
          %s171 = smul.u32 4, %s18
          %173 = vsyncadd %s167, 0
          %s174 = smul.addr %s171, 4
          %s175 = smul.addr %s174, 8
          %s176 = scalar_lea.hbm %s1, %s175
          %s177 = sshll.u32 %s176, 4
          %s178 = int_to_ptr.hbm [resolvable:$true] %s177
          %s179 = sshll.u32 %s170, 4
          %s180 = int_to_ptr.vmem [resolvable:$true] %s179
          %185 = dma.hbm_to_vmem [thread:$0]  %s178, 2048, %s180, %s167, 128, 128, 8
        $region24: #{tpu_custom_call.1} parent=15 // pred_fallthru
          _
        // Predicated region
        $region25: #{tpu_custom_call.1} parent=15 // pred_check
          %p186 = pneg %p90
        $region26: #{tpu_custom_call.1} parent=15 // pred_check_branch
          %188 = sbr.rel (%p186) target = $region28
        $region27: #{tpu_custom_call.1} parent=15 // pred_region
          %s189 = sand.u32 %s18, 1
          %s190 = scalar_lea.sflag [#allocation6], %s189
          %s191 = sand.u32 %s80, 1
          %s192 = smul.addr %s191, 4
          %s193 = scalar_lea.vmem [#allocation7], %s192
          %s194 = smul.u32 4, %s18
          %196 = vsyncadd %s190, 0
          %s197 = scalar_lea.hbm %s2, %s194
          %s198 = sshll.u32 %s197, 4
          %s199 = int_to_ptr.hbm [resolvable:$true] %s198
          %s200 = sshll.u32 %s193, 4
          %s201 = int_to_ptr.vmem [resolvable:$true] %s200
          %206 = dma.hbm_to_vmem [thread:$0]  %s199, 64, %s201, %s190, 16, 16, 1
        $region28: #{tpu_custom_call.1} parent=15 // pred_fallthru
          _
      $region16: #{tpu_custom_call.1} parent=5 // pred_fallthru
        _
      %p207 = scmp.le.s32.totalorder 1, %s18
      %p208 = scmp.lt.s32.totalorder %s18, 3
      %p209 = pnand %p207, %p208
      %p210 = pneg %p209
      // Predicated region
      $region29: #{tpu_custom_call.1} parent=5 // pred_check
        _
      $region30: #{tpu_custom_call.1} parent=5 // pred_check_branch
        %212 = sbr.rel (%p209) target = $region32
      $region31: #{tpu_custom_call.1} parent=5 // pred_region
        %s213 = ssub.s32 %s18, 1
        %s214 = sand.u32 %s31, 1
        %s215 = scalar_lea.sflag [#allocation3], %s214
        %s216 = sand.u32 %s31, 1
        %s217 = smul.addr %s216, 32
        %s218 = scalar_lea.vmem [#allocation2], %s217
        // Predicated region
        $region33: #{tpu_custom_call.1} parent=31 // pred_check
          %p219 = pneg %p44
        $region34: #{tpu_custom_call.1} parent=31 // pred_check_branch
          %221 = sbr.rel (%p219) target = $region36
        $region35: #{tpu_custom_call.1} parent=31 // pred_region
          %223 = dma.done %s215, 512
        $region36: #{tpu_custom_call.1} parent=31 // pred_fallthru
          _
        %s224 = sand.u32 %s23, 1
        %s225 = scalar_lea.sflag [#allocation6], %s224
        %s226 = sand.u32 %s57, 1
        %s227 = smul.addr %s226, 128
        %s228 = scalar_lea.vmem [#allocation5], %s227
        // Predicated region
        $region37: #{tpu_custom_call.1} parent=31 // pred_check
          %p229 = pneg %p70
        $region38: #{tpu_custom_call.1} parent=31 // pred_check_branch
          %231 = sbr.rel (%p229) target = $region40
        $region39: #{tpu_custom_call.1} parent=31 // pred_region
          %233 = dma.done %s225, 2048
        $region40: #{tpu_custom_call.1} parent=31 // pred_fallthru
          _
        %s234 = sand.u32 %s23, 1
        %s235 = scalar_lea.sflag [#allocation6], %s234
        %s236 = sand.u32 %s83, 1
        %s237 = smul.addr %s236, 4
        %s238 = scalar_lea.vmem [#allocation7], %s237
        // Predicated region
        $region41: #{tpu_custom_call.1} parent=31 // pred_check
          %p239 = pneg %p96
        $region42: #{tpu_custom_call.1} parent=31 // pred_check_branch
          %241 = sbr.rel (%p239) target = $region44
        $region43: #{tpu_custom_call.1} parent=31 // pred_region
          %243 = dma.done %s235, 64
        $region44: #{tpu_custom_call.1} parent=31 // pred_fallthru
          _
        %s244 = sand.u32 %s31, 1
        %s245 = scalar_lea.sflag [#allocation3], %s244
        %s246 = sand.u32 %s31, 1
        %s247 = smul.addr %s246, 32
        %s248 = scalar_lea.vmem [#allocation2], %s247
        %p249 = pneg %p44
        %p250 = pneg %p41
        %s251 = sand.u32 %s23, 1
        %s252 = scalar_lea.sflag [#allocation6], %s251
        %s253 = sand.u32 %s57, 1
        %s254 = smul.addr %s253, 128
        %s255 = scalar_lea.vmem [#allocation5], %s254
        %p256 = pneg %p70
        %p257 = pneg %p67
        %s258 = sand.u32 %s23, 1
        %s259 = scalar_lea.sflag [#allocation6], %s258
        %s260 = sand.u32 %s83, 1
        %s261 = smul.addr %s260, 4
        %s262 = scalar_lea.vmem [#allocation7], %s261
        %p263 = pneg %p96
        %p264 = pneg %p93
        %p265 = pneg %p122
        %p266 = pneg %p119
        %s267 = sand.u32 %s109, 1
        %s268 = scalar_lea.sflag [#allocation4], %s267
        %s269 = sand.u32 %s109, 1
        %s270 = smul.addr %s269, 32
        %s271 = scalar_lea.vmem [#allocation8], %s270
        %s272 = smul.u32 4, %s23
        %s273 = smul.u32 4, %s23
        %s274 = smul.u32 4, %s23
        %s275 = smul.u32 4, %s23
        %v276 = vld [vmem:[%s218] sm:$0xff]
        %v277 = vld [vmem:[%s218 + $0x8] sm:$0xff]
        %v278 = vld [vmem:[%s218 + $0x10] sm:$0xff]
        %v279 = vld [vmem:[%s218 + $0x18] sm:$0xff]
        %v280 = vld [vmem:[%s228] sm:$0xff]
        %v281 = vld [vmem:[%s228 + $0x8] sm:$0xff]
        %v282 = vld [vmem:[%s228 + $0x10] sm:$0xff]
        %v283 = vld [vmem:[%s228 + $0x18] sm:$0xff]
        %v284 = vld [vmem:[%s228 + $0x20] sm:$0xff]
        %v285 = vld [vmem:[%s228 + $0x28] sm:$0xff]
        %v286 = vld [vmem:[%s228 + $0x30] sm:$0xff]
        %v287 = vld [vmem:[%s228 + $0x38] sm:$0xff]
        %v288 = vld [vmem:[%s228 + $0x40] sm:$0xff]
        %v289 = vld [vmem:[%s228 + $0x48] sm:$0xff]
        %v290 = vld [vmem:[%s228 + $0x50] sm:$0xff]
        %v291 = vld [vmem:[%s228 + $0x58] sm:$0xff]
        %v292 = vld [vmem:[%s228 + $0x60] sm:$0xff]
        %v293 = vld [vmem:[%s228 + $0x68] sm:$0xff]
        %v294 = vld [vmem:[%s228 + $0x70] sm:$0xff]
        %v295 = vld [vmem:[%s228 + $0x78] sm:$0xff]
        %v296 = vld [vmem:[%s238] sm:$0x1]
        %v297 = vld [vmem:[%s238 + $0x1] sm:$0x1]
        %v298 = vld [vmem:[%s238 + $0x2] sm:$0x1]
        %v299 = vld [vmem:[%s238 + $0x3] sm:$0x1]
        %v304 = vperm.slane %v296, 0
        %v305 = vperm.slane %v297, 0
        %v306 = vperm.slane %v298, 0
        %v307 = vperm.slane %v299, 0
        %vm312 = vcmask 261120
        %v314 = vsel %vm312, %v276, 0
        %v317 = vsel %vm312, %v280, 0
        %v320 = vsel %vm312, %v281, 0
        %v323 = vsel %vm312, %v282, 0
        %v326 = vsel %vm312, %v283, 0
        %328 = vmatpush.xpose.msra.mxu0 0.0
        %329 = vmatpush.xpose.msra.mxu0 0.0
        %330 = vmatpush.xpose.msra.mxu0 0.0
        %331 = vmatpush.xpose.msra.mxu0 0.0
        %332 = vmatpush.xpose.msra.mxu0 0.0
        %333 = vmatpush.xpose.msra.mxu0 0.0
        %334 = vmatpush.xpose.msra.mxu0 0.0
        %335 = vmatpush.xpose.msra.mxu0 0.0
        %336 = vmatpush.xpose.msra.mxu0 0.0
        %337 = vmatpush.xpose.msra.mxu0 0.0
        %338 = vmatpush.xpose.msra.mxu0 0.0
        %339 = vmatpush.xpose.msra.mxu0 0.0
        %340 = vmatpush.xpose.msra.mxu0 %v326
        %341 = vmatpush.xpose.msra.mxu0 %v323
        %342 = vmatpush.xpose.msra.mxu0 %v320
        %343 = vmatpush.xpose.msra.mxu0 %v317
        %344 = vmatmul.f32.gmra.mxu0 %v314
        %v345 = vpop.f32.mrf.mxu0
        %v346 = vadd.f32 %v304, %v345
        %347 = vdwg.mxu0
        %v349 = vsel %vm312, %v277, 0
        %v352 = vsel %vm312, %v284, 0
        %v355 = vsel %vm312, %v285, 0
        %v358 = vsel %vm312, %v286, 0
        %v361 = vsel %vm312, %v287, 0
        %363 = vmatpush.xpose.msra.mxu0 0.0
        %364 = vmatpush.xpose.msra.mxu0 0.0
        %365 = vmatpush.xpose.msra.mxu0 0.0
        %366 = vmatpush.xpose.msra.mxu0 0.0
        %367 = vmatpush.xpose.msra.mxu0 0.0
        %368 = vmatpush.xpose.msra.mxu0 0.0
        %369 = vmatpush.xpose.msra.mxu0 0.0
        %370 = vmatpush.xpose.msra.mxu0 0.0
        %371 = vmatpush.xpose.msra.mxu0 0.0
        %372 = vmatpush.xpose.msra.mxu0 0.0
        %373 = vmatpush.xpose.msra.mxu0 0.0
        %374 = vmatpush.xpose.msra.mxu0 0.0
        %375 = vmatpush.xpose.msra.mxu0 %v361
        %376 = vmatpush.xpose.msra.mxu0 %v358
        %377 = vmatpush.xpose.msra.mxu0 %v355
        %378 = vmatpush.xpose.msra.mxu0 %v352
        %379 = vmatmul.f32.gmra.mxu0 %v349
        %v380 = vpop.f32.mrf.mxu0
        %v381 = vadd.f32 %v305, %v380
        %382 = vdwg.mxu0
        %v384 = vsel %vm312, %v278, 0
        %v387 = vsel %vm312, %v288, 0
        %v390 = vsel %vm312, %v289, 0
        %v393 = vsel %vm312, %v290, 0
        %v396 = vsel %vm312, %v291, 0
        %398 = vmatpush.xpose.msra.mxu0 0.0
        %399 = vmatpush.xpose.msra.mxu0 0.0
        %400 = vmatpush.xpose.msra.mxu0 0.0
        %401 = vmatpush.xpose.msra.mxu0 0.0
        %402 = vmatpush.xpose.msra.mxu0 0.0
        %403 = vmatpush.xpose.msra.mxu0 0.0
        %404 = vmatpush.xpose.msra.mxu0 0.0
        %405 = vmatpush.xpose.msra.mxu0 0.0
        %406 = vmatpush.xpose.msra.mxu0 0.0
        %407 = vmatpush.xpose.msra.mxu0 0.0
        %408 = vmatpush.xpose.msra.mxu0 0.0
        %409 = vmatpush.xpose.msra.mxu0 0.0
        %410 = vmatpush.xpose.msra.mxu0 %v396
        %411 = vmatpush.xpose.msra.mxu0 %v393
        %412 = vmatpush.xpose.msra.mxu0 %v390
        %413 = vmatpush.xpose.msra.mxu0 %v387
        %414 = vmatmul.f32.gmra.mxu0 %v384
        %v415 = vpop.f32.mrf.mxu0
        %v416 = vadd.f32 %v306, %v415
        %417 = vdwg.mxu0
        %v419 = vsel %vm312, %v279, 0
        %v422 = vsel %vm312, %v292, 0
        %v425 = vsel %vm312, %v293, 0
        %v428 = vsel %vm312, %v294, 0
        %v431 = vsel %vm312, %v295, 0
        %433 = vmatpush.xpose.msra.mxu0 0.0
        %434 = vmatpush.xpose.msra.mxu0 0.0
        %435 = vmatpush.xpose.msra.mxu0 0.0
        %436 = vmatpush.xpose.msra.mxu0 0.0
        %437 = vmatpush.xpose.msra.mxu0 0.0
        %438 = vmatpush.xpose.msra.mxu0 0.0
        %439 = vmatpush.xpose.msra.mxu0 0.0
        %440 = vmatpush.xpose.msra.mxu0 0.0
        %441 = vmatpush.xpose.msra.mxu0 0.0
        %442 = vmatpush.xpose.msra.mxu0 0.0
        %443 = vmatpush.xpose.msra.mxu0 0.0
        %444 = vmatpush.xpose.msra.mxu0 0.0
        %445 = vmatpush.xpose.msra.mxu0 %v431
        %446 = vmatpush.xpose.msra.mxu0 %v428
        %447 = vmatpush.xpose.msra.mxu0 %v425
        %448 = vmatpush.xpose.msra.mxu0 %v422
        %449 = vmatmul.f32.gmra.mxu0 %v419
        %v450 = vpop.f32.mrf.mxu0
        %v451 = vadd.f32 %v307, %v450
        %452 = vdwg.mxu0
        %453 = vst.msk [vmem:[%s271] sm:$0xff] %vm312, %v346
        %454 = vst.msk [vmem:[%s271 + $0x8] sm:$0xff] %vm312, %v381
        %455 = vst.msk [vmem:[%s271 + $0x10] sm:$0xff] %vm312, %v416
        %456 = vst.msk [vmem:[%s271 + $0x18] sm:$0xff] %vm312, %v451
        %s457 = sand.u32 %s109, 1
        %s458 = scalar_lea.sflag [#allocation4], %s457
        %s459 = sand.u32 %s109, 1
        %s460 = smul.addr %s459, 32
        %s461 = scalar_lea.vmem [#allocation8], %s460
        // Predicated region
        $region45: #{tpu_custom_call.1} parent=31 // pred_check
          %p462 = pneg %p119
        $region46: #{tpu_custom_call.1} parent=31 // pred_check_branch
          %464 = sbr.rel (%p462) target = $region48
        $region47: #{tpu_custom_call.1} parent=31 // pred_region
          %s465 = smul.u32 4, %s23
          %467 = vsyncadd %s458, 0
          %s468 = smul.addr %s465, 8
          %s469 = scalar_lea.hbm %s3, %s468
          %s470 = sshll.u32 %s461, 4
          %s471 = int_to_ptr.vmem [resolvable:$true] %s470
          %s472 = sshll.u32 %s469, 4
          %s473 = int_to_ptr.hbm [resolvable:$true] %s472
          %478 = dma.vmem_to_hbm [thread:$0]  %s471, 512, %s473, %s458, 128, 128, 8
        $region48: #{tpu_custom_call.1} parent=31 // pred_fallthru
          _
      $region32: #{tpu_custom_call.1} parent=5 // pred_fallthru
        _
      %p479 = scmp.le.s32.totalorder 2, %s18
      // Predicated region
      $region49: #{tpu_custom_call.1} parent=5 // pred_check
        %p480 = pneg %p479
      $region50: #{tpu_custom_call.1} parent=5 // pred_check_branch
        %482 = sbr.rel (%p480) target = $region52
      $region51: #{tpu_custom_call.1} parent=5 // pred_region
        %s483 = ssub.s32 %s18, 2
        // Predicated region
        $region53: #{tpu_custom_call.1} parent=51 // pred_check
          %p484 = pneg %p125
        $region54: #{tpu_custom_call.1} parent=51 // pred_check_branch
          %486 = sbr.rel (%p484) target = $region56
        $region55: #{tpu_custom_call.1} parent=51 // pred_region
          %s487 = sand.u32 %s110, 1
          %s488 = scalar_lea.sflag [#allocation4], %s487
          %s489 = sand.u32 %s110, 1
          %s490 = smul.addr %s489, 32
          %s491 = scalar_lea.vmem [#allocation8], %s490
          %493 = dma.done %s488, 512
        $region56: #{tpu_custom_call.1} parent=51 // pred_fallthru
          _
      $region52: #{tpu_custom_call.1} parent=5 // pred_fallthru
        _
    $region6: #{tpu_custom_call.1} parent=1 // loop_footer
      %s22 = sadd.s32 1, %s18
    $region7: #{tpu_custom_call.1} parent=1 // loop_footer_branch
      %17 = sbr.rel target = $region3
    $region8: #{tpu_custom_call.1} parent=1 // loop_exit
      _
    %494 = vsyncpa [#allocation3], 1
    %s495 = scalar_lea.sflag [#allocation3], 1
    %496 = vsyncpa %s495, 1
    %497 = vsyncpa [#allocation6], 1
    %s498 = scalar_lea.sflag [#allocation6], 1
    %499 = vsyncpa %s498, 1
    %500 = vsyncpa [#allocation4], 1
    %s501 = scalar_lea.sflag [#allocation4], 1
    %502 = vsyncpa %s501, 1

</llo_original>
